<compile_context>
chip_gen: v6e
topology: v6e:2x2x1
jax: 0.10.0
libtpu: 0.0.40
codegen_flags: <defaults>
</compile_context>

<pallas_src>
import numpy as np
import jax
import jax.numpy as jnp
from jax import lax
from jax.experimental import pallas as pl
from jax.experimental.pallas import tpu as pltpu

NEG = -1.0e30  # finite stand-in for -inf; keeps logaddexp NaN-free everywhere.


def _logaddexp(a, b):
    # 1 exp + 1 log (EUP) instead of 2 exp + 1 log; -inf-safe via the NEG sentinel.
    mx = jnp.maximum(a, b)
    mn = jnp.minimum(a, b)
    return mx + jnp.log(1.0 + jnp.exp(mn - mx))


def _round_up(x, m):
    return ((x + m - 1) // m) * m


def _vmem_limit_bytes():
    # Generation-aware scoped-VMEM cap: ~3/4 of physical (48 MiB on v7x's 64 MiB,
    # 96 MiB on v5e/v6e's 128 MiB), conservative 48 MiB fallback if the query fails.
    cap = 64 * 1024 * 1024
    try:
        cap = int(pltpu.get_tpu_info().vmem_capacity_bytes)
    except Exception:
        pass
    return min((cap * 3) // 4, 96 * 1024 * 1024)


def _pick_tiles(T, U, V, itemsize, vmem_limit):
    """Pick (T_A: emission DMA block rows, T_DP: DP tile rows, CHUNK: in-kernel reduce rows)."""
    row_bytes = max(U * V * itemsize, 1)
    t8 = _round_up(T, 8)
    # In-kernel compute chunk: ~1 MiB of log_probs rows -> bounded vreg live ranges.
    chunk = max(8, min(256, (1 << 20) // row_bytes, t8))
    chunk = max(8, (chunk // 8) * 8)
    # DMA block (double-buffered by the pipeline): <= ~1/3 of the VMEM limit per buffer,
    # capped at 1024 rows (roofline capture plateaus), always a multiple of `chunk`.
    t_a = (vmem_limit // 3) // row_bytes
    t_a = min(max(t_a, chunk), 1024, _round_up(T, chunk))
    t_a = max((t_a // chunk) * chunk, chunk)
    # DP tile along T: largest of {32,16,8} dividing t_a with a small (double-buffered) footprint.
    dp_budget = max(vmem_limit // 4, 1)
    t_dp = 8
    for cand in (32, 16, 8):
        if t_a % cand == 0 and 4 * cand * U * 128 * 4 <= dp_budget:
            t_dp = cand
            break
    return t_a, t_dp, chunk


# --------------------------------------------------------------------------------------
# Kernel A: emission extraction  (1, T_A, U, V) -> blank/label (1, T_A, U) per grid step
# --------------------------------------------------------------------------------------
def _make_emission_kernel(T_BLK, CHUNK, U, V, T_total, blank):
    n_chunks = T_BLK // CHUNK

    def kernel(tgt_ref, lp_ref, blank_ref, label_ref):
        iota_v = lax.broadcasted_iota(jnp.int32, (U, V), 1)          # (U, V) vocab ids
        blank_sel = (iota_v == blank)[None, :, :]                    # static blank mask
        label_sel = (iota_v == tgt_ref[0])[None, :, :]               # in-kernel one-hot from int32 targets
        t0 = pl.program_id(1) * T_BLK
        iota_c = lax.broadcasted_iota(jnp.int32, (CHUNK, U), 0)

        def chunk_body(i, carry):
            r0 = pl.multiple_of(i * CHUNK, CHUNK)
            lp = lp_ref[0, pl.ds(r0, CHUNK)]                         # (CHUNK, U, V), input dtype
            # where(...) not multiply: -inf log-probs at masked entries contribute 0, never NaN.
            # Exactly one non-zero term per (t, u) -> exact even in bf16; cast tiny result to f32.
            be = jnp.sum(jnp.where(blank_sel, lp, 0.0), axis=-1)
            le = jnp.sum(jnp.where(label_sel, lp, 0.0), axis=-1)
            # Frames t >= T_total only exist in the ragged last T block (log_probs is NOT padded;
            # the out-of-bounds rows of the block hold unspecified data) -> force them to NEG.
            t_valid = (t0 + r0 + iota_c) < T_total
            blank_ref[0, pl.ds(r0, CHUNK)] = jnp.where(
                t_valid, jnp.maximum(be.astype(jnp.float32), NEG), NEG)
            label_ref[0, pl.ds(r0, CHUNK)] = jnp.where(
                t_valid, jnp.maximum(le.astype(jnp.float32), NEG), NEG)
            return carry

        lax.fori_loop(0, n_chunks, chunk_body, 0)

    return kernel


# --------------------------------------------------------------------------------------
# Kernel B: lane-batched alpha recursion; per frame a log-semiring Hillis-Steele scan over U
# --------------------------------------------------------------------------------------
def _make_dp_kernel(T_DP, U, B_TILE):
    strides = []
    k = 1
    while k < U:
        strides.append(k)
        k *= 2

    def kernel(tlast_ref, ulast_ref, blank_ref, label_ref, out_ref, beta_ref):
        tt = pl.program_id(1)

        @pl.when(tt == 0)
        def _init():
            # beta[-1] row: reachable only at u == 0.
            row = lax.broadcasted_iota(jnp.int32, (U, B_TILE), 0)
            beta_ref[...] = jnp.where(row == 0, 0.0, NEG)
            out_ref[...] = jnp.zeros_like(out_ref)

        t_last = tlast_ref[...]                                   # (1, B_TILE) int32: input_length - 1
        u_last = ulast_ref[...]                                   # (1, B_TILE) int32: target_length
        row_u = lax.broadcasted_iota(jnp.int32, (U, B_TILE), 0)
        u_sel = row_u == u_last                                   # (U, B_TILE) target-length row one-hot
        shift_masks = [row_u >= k for k in strides]               # hoisted out of the frame loop
        lab_mask = row_u >= 1
        t0 = tt * T_DP

        def frame(tau, carry):
            beta_prev, score = carry                              # (U, B_TILE), (1, B_TILE)
            bl = blank_ref[tau]                                   # (U, B_TILE) per-frame ref slice
            lb = label_ref[tau]                                   # (U, B_TILE)

            # alpha[t][u] = logaddexp(beta_prev[u], alpha[t][u-1] + label[t][u-1]) is a first-order
            # linear recurrence in the log semiring (x[u] = b[u] (+) (c[u] * x[u-1])); solve it with
            # a Hillis-Steele scan: log2(U) full-(U,B_TILE)-vreg steps (sublane roll -> XLU,
            # logaddexp -> EUP) instead of a U-long serial chain of (1, B_TILE) ops.
            c = jnp.where(lab_mask, pltpu.roll(lb, shift=1, axis=0), NEG)   # c[u]=label[u-1], c[0]=NEG
            bv = beta_prev
            for kk, m in zip(strides, shift_masks):
                c_sh = pltpu.roll(c, shift=kk, axis=0)
                b_sh = pltpu.roll(bv, shift=kk, axis=0)
                bv = jnp.where(m, _logaddexp(bv, c + b_sh), bv)
                c = jnp.where(m, c + c_sh, c)
            beta_new = bv + bl                                    # beta[t][u] = alpha[t][u] + blank[t][u]

            # Vectorized score fold: pick beta[t_last][u_last] with one mask + sublane reduce.
            # Padded batch lanes carry t_last = -1 (sentinel) and never match; padded frames
            # t >= T never match a valid t_last (< T) either.
            hit = jnp.logical_and(t_last == (t0 + tau), u_sel)
            score = score + jnp.sum(jnp.where(hit, beta_new, 0.0), axis=0, keepdims=True)
            return beta_new, score

        beta, score = lax.fori_loop(0, T_DP, frame,
                                    (beta_ref[...], out_ref[...]), unroll=2)
        beta_ref[...] = beta                                      # carry frontier to the next T tile
        out_ref[...] = score                                      # resident accumulator

    return kernel


# --------------------------------------------------------------------------------------
# Wrapper
# --------------------------------------------------------------------------------------
def rnnt_per_seq_loglik(log_probs, targets, input_lengths, target_lengths, blank):
    """Per-sequence total alignment log-likelihood (== k2 lattice tot_scores)."""
    B, T, U, V = log_probs.shape
    itemsize = jnp.dtype(log_probs.dtype).itemsize
    vmem_limit = _vmem_limit_bytes()
    t_a, t_dp, chunk = _pick_tiles(T, U, V, itemsize, vmem_limit)
    n_ta = (T + t_a - 1) // t_a
    T_out = n_ta * t_a

    # Targets as int32 (B, U, 1); padded positions are never selected by the DP.
    tgt = targets.astype(jnp.int32)
    if tgt.shape[1] < U:
        tgt = jnp.pad(tgt, ((0, 0), (0, U - tgt.shape[1])))
    tgt = tgt.reshape(B, U, 1)

    emis_kernel = _make_emission_kernel(t_a, chunk, U, V, T, blank)
    blank_bTU, label_bTU = pl.pallas_call(
        emis_kernel,
        out_shape=(jax.ShapeDtypeStruct((B, T_out, U), jnp.float32),
                   jax.ShapeDtypeStruct((B, T_out, U), jnp.float32)),
        grid=(B, n_ta),
        in_specs=[pl.BlockSpec((1, U, 1), lambda b, t: (b, 0, 0)),
                  pl.BlockSpec((1, t_a, U, V), lambda b, t: (b, t, 0, 0))],
        out_specs=[pl.BlockSpec((1, t_a, U), lambda b, t: (b, t, 0)),
                   pl.BlockSpec((1, t_a, U), lambda b, t: (b, t, 0))],
        compiler_params=pltpu.CompilerParams(
            dimension_semantics=("parallel", "parallel"),
            vmem_limit_bytes=vmem_limit),
    )(tgt, log_probs)

    # Tiny (B, T, U) -> (T, U, B) transposes (V x smaller than the streamed input) so the DP
    # lane-batches across the batch.
    blank_TUB = jnp.transpose(blank_bTU, (1, 2, 0))
    label_TUB = jnp.transpose(label_bTU, (1, 2, 0))

    t_last = (input_lengths.astype(jnp.int32) - 1).reshape(1, B)
    u_last = target_lengths.astype(jnp.int32).reshape(1, B)

    b_tile = min(B, 128)
    B_pad = _round_up(B, b_tile)
    if B_pad != B:
        blank_TUB = jnp.pad(blank_TUB, ((0, 0), (0, 0), (0, B_pad - B)))
        label_TUB = jnp.pad(label_TUB, ((0, 0), (0, 0), (0, B_pad - B)))
        t_last = jnp.pad(t_last, ((0, 0), (0, B_pad - B)), constant_values=-1)
        u_last = jnp.pad(u_last, ((0, 0), (0, B_pad - B)))

    dp_kernel = _make_dp_kernel(t_dp, U, b_tile)
    out = pl.pallas_call(
        dp_kernel,
        out_shape=jax.ShapeDtypeStruct((1, B_pad), jnp.float32),
        grid=(B_pad // b_tile, T_out // t_dp),
        in_specs=[pl.BlockSpec((1, b_tile), lambda bb, tt: (0, bb)),
                  pl.BlockSpec((1, b_tile), lambda bb, tt: (0, bb)),
                  pl.BlockSpec((t_dp, U, b_tile), lambda bb, tt: (tt, 0, bb)),
                  pl.BlockSpec((t_dp, U, b_tile), lambda bb, tt: (tt, 0, bb))],
        out_specs=pl.BlockSpec((1, b_tile), lambda bb, tt: (0, bb)),
        scratch_shapes=[pltpu.VMEM((U, b_tile), jnp.float32)],
        compiler_params=pltpu.CompilerParams(
            dimension_semantics=("parallel", "arbitrary"),
            vmem_limit_bytes=vmem_limit),
    )(t_last, u_last, blank_TUB, label_TUB)
    scores = out[0, :B]

    # Degenerate lengths -> -inf so the finite mask excludes them (matches k2 behavior).
    il = input_lengths.astype(jnp.int32)
    tl = target_lengths.astype(jnp.int32)
    valid = (il >= 1) & (il <= T) & (tl >= 0) & (tl <= U - 1)
    return jnp.where(valid, scores, -jnp.inf)


class RnntLoss:
    """JAX/Pallas port of nemo...k2.ml_loss.RnntLoss forward semantics."""

    def __init__(self, num_classes, blank, reduction="mean",
                 topo_type="minimal", topo_with_self_loops=True,
                 predictor_window_size=0, predictor_step_size=1):
        if topo_type != "minimal":
            raise NotImplementedError("Only topo_type=`minimal` is supported.")
        self.num_classes = num_classes
        self.blank = blank
        self.reduction = reduction
        self.predictor_window_size = predictor_window_size
        self.predictor_step_size = predictor_step_size

    def __call__(self, log_probs, targets, input_lengths, target_lengths):
        assert (self.predictor_window_size == 0
                or log_probs.shape[2] <= self.predictor_window_size + 1)
        tot_scores = rnnt_per_seq_loglik(log_probs, targets, input_lengths,
                                         target_lengths, self.blank)
        mask = jnp.isfinite(tot_scores)
        if self.reduction == "mean":
            tot = jnp.sum(jnp.where(mask, tot_scores, 0.0)) / jnp.maximum(jnp.sum(mask), 1)
            return -tot, mask
        elif self.reduction == "sum":
            return -jnp.sum(jnp.where(mask, tot_scores, 0.0)), mask
        else:  # 'none'
            return -jnp.where(mask, tot_scores, 0.0), mask


def _numpy_reference(log_probs, targets, input_lengths, target_lengths, blank):
    lp = np.asarray(log_probs, np.float64)
    tg = np.asarray(targets)
    il = np.asarray(input_lengths)
    tl = np.asarray(target_lengths)
    B = lp.shape[0]
    lls = []
    for b in range(B):
        Tb, Ub = int(il[b]), int(tl[b]) + 1
        a = np.full((Tb, Ub), -np.inf)
        a[0, 0] = 0.0
        for t in range(Tb):
            for u in range(Ub):
                if t == 0 and u == 0:
                    continue
                v = -np.inf
                if t > 0:
                    v = np.logaddexp(v, a[t - 1, u] + lp[b, t - 1, u, blank])
                if u > 0:
                    v = np.logaddexp(v, a[t, u - 1] + lp[b, t, u - 1, tg[b, u - 1]])
                a[t, u] = v
        lls.append(a[Tb - 1, Ub - 1] + lp[b, Tb - 1, Ub - 1, blank])
    return np.array(lls)


if __name__ == "__main__":
    B, T, U, V = 2, 19, 8, 128   # batch, frames (deliberately not a multiple of 8), U = max_target_len + 1, vocab
    blank = 0

    key = jax.random.PRNGKey(0)
    k1, k2 = jax.random.split(key)
    logits = jax.random.normal(k1, (B, T, U, V), dtype=jnp.float32)
    log_probs = jax.nn.log_softmax(logits, axis=-1)                      # (B, T, U, V)
    targets = jax.random.randint(k2, (B, U - 1), 1, V, dtype=jnp.int32)  # labels != blank
    input_lengths = jnp.array([T, 13], dtype=jnp.int32)
    target_lengths = jnp.array([U - 1, 5], dtype=jnp.int32)

    loss_mod = RnntLoss(num_classes=V, blank=blank, reduction="mean")
    loss, mask = loss_mod(log_probs, targets, input_lengths, target_lengths)
    loss = jax.block_until_ready(loss)
    mask = jax.block_until_ready(mask)

    # correctness check against a pure-numpy RNNT forward DP
    ref_ll = _numpy_reference(log_probs, targets, input_lengths, target_lengths, blank)
    ref_loss = -ref_ll.mean()
    np.testing.assert_allclose(float(loss), ref_loss, rtol=1e-4, atol=1e-4)
    assert bool(np.all(np.asarray(mask)))

    print("KERNEL_OK")
</pallas_src>

<mosaic_0001>
module attributes {stable_mosaic.version = 11 : i64} {
  func.func @kernel(%arg0: i32, %arg1: i32, %arg2: memref<1x8x1xi32, #tpu.memory_space<vmem>>, %arg3: memref<1x24x8x128xf32, #tpu.memory_space<vmem>>, %arg4: memref<1x24x8xf32, #tpu.memory_space<vmem>>, %arg5: memref<1x24x8xf32, #tpu.memory_space<vmem>>) attributes {dimension_semantics = [#tpu.dimension_semantics<parallel>, #tpu.dimension_semantics<parallel>], iteration_bounds = array<i64: 2, 1>, scalar_prefetch = 0 : i64, scratch_operands = 0 : i64, tpu.core_type = #tpu.core_type<tc>, window_params = [{transform_indices = @transform_0, window_bounds = array<i64: 1, 8, 1>}, {transform_indices = @transform_1, window_bounds = array<i64: 1, 24, 8, 128>}, {transform_indices = @transform_2, window_bounds = array<i64: 1, 24, 8>}, {transform_indices = @transform_3, window_bounds = array<i64: 1, 24, 8>}]} {
    %0 = tpu.iota {dimensions = array<i32: 1>} : vector<8x128xi32>
    %c0_i32 = arith.constant 0 : i32
    %1 = vector.broadcast %c0_i32 : i32 to vector<8x128xi32>
    %2 = arith.cmpi eq, %0, %1 : vector<8x128xi32>
    %3 = vector.shape_cast %2 : vector<8x128xi1> to vector<1x8x128xi1>
    %c0 = arith.constant 0 : index
    %c0_0 = arith.constant 0 : index
    %c0_1 = arith.constant 0 : index
    %4 = vector.load %arg2[%c0, %c0_0, %c0_1] : memref<1x8x1xi32, #tpu.memory_space<vmem>>, vector<1x8x1xi32>
    %5 = vector.shape_cast %4 : vector<1x8x1xi32> to vector<8x1xi32>
    %6 = vector.broadcast %5 : vector<8x1xi32> to vector<8x128xi32>
    %7 = arith.cmpi eq, %0, %6 : vector<8x128xi32>
    %8 = vector.shape_cast %7 : vector<8x128xi1> to vector<1x8x128xi1>
    %c24_i32 = arith.constant 24 : i32
    %9 = arith.muli %arg1, %c24_i32 : i32
    %10 = tpu.iota {dimensions = array<i32: 0>} : vector<24x8xi32>
    %c0_i32_2 = arith.constant 0 : i32
    %c24_i32_3 = arith.constant 24 : i32
    %11 = arith.muli %c0_i32_2, %c24_i32_3 : i32
    %12 = tpu.assume_multiple %11, 24 : i32
    %c0_4 = arith.constant 0 : index
    %13 = arith.index_cast %12 : i32 to index
    %c0_5 = arith.constant 0 : index
    %c0_6 = arith.constant 0 : index
    %14 = vector.load %arg3[%c0_4, %13, %c0_5, %c0_6] : memref<1x24x8x128xf32, #tpu.memory_space<vmem>>, vector<1x24x8x128xf32>
    %15 = vector.shape_cast %14 : vector<1x24x8x128xf32> to vector<24x8x128xf32>
    %cst = arith.constant 0.000000e+00 : f32
    %16 = vector.shape_cast %3 : vector<1x8x128xi1> to vector<1x8x128xi1>
    %17 = vector.broadcast %16 : vector<1x8x128xi1> to vector<24x8x128xi1>
    %18 = vector.broadcast %cst : f32 to vector<24x8x128xf32>
    %19 = arith.select %17, %15, %18 : vector<24x8x128xi1>, vector<24x8x128xf32>
    %cst_7 = arith.constant dense<0.000000e+00> : vector<24x8xf32>
    %20 = vector.multi_reduction <add>, %19, %cst_7 [2] : vector<24x8x128xf32> to vector<24x8xf32>
    %cst_8 = arith.constant 0.000000e+00 : f32
    %21 = vector.shape_cast %8 : vector<1x8x128xi1> to vector<1x8x128xi1>
    %22 = vector.broadcast %21 : vector<1x8x128xi1> to vector<24x8x128xi1>
    %23 = vector.broadcast %cst_8 : f32 to vector<24x8x128xf32>
    %24 = arith.select %22, %15, %23 : vector<24x8x128xi1>, vector<24x8x128xf32>
    %cst_9 = arith.constant dense<0.000000e+00> : vector<24x8xf32>
    %25 = vector.multi_reduction <add>, %24, %cst_9 [2] : vector<24x8x128xf32> to vector<24x8xf32>
    %26 = arith.addi %9, %12 : i32
    %27 = vector.broadcast %26 : i32 to vector<24x8xi32>
    %28 = arith.addi %27, %10 : vector<24x8xi32>
    %c19_i32 = arith.constant 19 : i32
    %29 = vector.broadcast %c19_i32 : i32 to vector<24x8xi32>
    %30 = arith.cmpi slt, %28, %29 : vector<24x8xi32>
    %cst_10 = arith.constant -1.000000e+30 : f32
    %31 = vector.broadcast %cst_10 : f32 to vector<24x8xf32>
    %32 = arith.maximumf %20, %31 : vector<24x8xf32>
    %cst_11 = arith.constant -1.000000e+30 : f32
    %33 = vector.broadcast %cst_11 : f32 to vector<24x8xf32>
    %34 = arith.select %30, %32, %33 : vector<24x8xi1>, vector<24x8xf32>
    %c0_12 = arith.constant 0 : index
    %35 = arith.index_cast %12 : i32 to index
    %c0_13 = arith.constant 0 : index
    %36 = vector.load %arg4[%c0_12, %35, %c0_13] : memref<1x24x8xf32, #tpu.memory_space<vmem>>, vector<1x24x8xf32>
    %37 = vector.shape_cast %36 : vector<1x24x8xf32> to vector<24x8xf32>
    %38 = vector.shape_cast %34 : vector<24x8xf32> to vector<1x24x8xf32>
    tpu.vector_store %arg4[%c0_12, %35, %c0_13], %38 {strides = array<i32>} : memref<1x24x8xf32, #tpu.memory_space<vmem>>, vector<1x24x8xf32>,
    %cst_14 = arith.constant -1.000000e+30 : f32
    %39 = vector.broadcast %cst_14 : f32 to vector<24x8xf32>
    %40 = arith.maximumf %25, %39 : vector<24x8xf32>
    %cst_15 = arith.constant -1.000000e+30 : f32
    %41 = vector.broadcast %cst_15 : f32 to vector<24x8xf32>
    %42 = arith.select %30, %40, %41 : vector<24x8xi1>, vector<24x8xf32>
    %c0_16 = arith.constant 0 : index
    %43 = arith.index_cast %12 : i32 to index
    %c0_17 = arith.constant 0 : index
    %44 = vector.load %arg5[%c0_16, %43, %c0_17] : memref<1x24x8xf32, #tpu.memory_space<vmem>>, vector<1x24x8xf32>
    %45 = vector.shape_cast %44 : vector<1x24x8xf32> to vector<24x8xf32>
    %46 = vector.shape_cast %42 : vector<24x8xf32> to vector<1x24x8xf32>
    tpu.vector_store %arg5[%c0_16, %43, %c0_17], %46 {strides = array<i32>} : memref<1x24x8xf32, #tpu.memory_space<vmem>>, vector<1x24x8xf32>,
    %c1_i32 = arith.constant 1 : i32
    return
  }
  func.func @transform_0(%arg0: i32, %arg1: i32) -> (i32, i32, i32) {
    %c0_i32 = arith.constant 0 : i32
    %c0_i32_0 = arith.constant 0 : i32
    %c0_i32_1 = arith.constant 0 : i32
    return %arg0, %c0_i32, %c0_i32_0 : i32, i32, i32
  }
  func.func @transform_1(%arg0: i32, %arg1: i32) -> (i32, i32, i32, i32) {
    %c0_i32 = arith.constant 0 : i32
    %c0_i32_0 = arith.constant 0 : i32
    %c0_i32_1 = arith.constant 0 : i32
    return %arg0, %arg1, %c0_i32, %c0_i32_0 : i32, i32, i32, i32
  }
  func.func @transform_2(%arg0: i32, %arg1: i32) -> (i32, i32, i32) {
    %c0_i32 = arith.constant 0 : i32
    %c0_i32_0 = arith.constant 0 : i32
    return %arg0, %arg1, %c0_i32 : i32, i32, i32
  }
  func.func @transform_3(%arg0: i32, %arg1: i32) -> (i32, i32, i32) {
    %c0_i32 = arith.constant 0 : i32
    %c0_i32_0 = arith.constant 0 : i32
    return %arg0, %arg1, %c0_i32 : i32, i32, i32
  }
}

</mosaic_0001>

<llo_original>
// kernel: tpu_custom_call.1
$region0: #{tpu_custom_call.1}
  #allocation0 [shape = 'u32[]', space=smem, size = 0x4, offset = 0x4, fixed_abs, tag = 'smem constant byte address 0x4 - core index']
  #allocation1 [shape = 'u32[144,128]{1,0:T(1,128)}', space=vmem, size = 0x12000, scoped, tag = 'internal scratch']
  %s0 = inlined_call_operand.vmem [shape: s32[2,8,1], index: 0, kind: input, shape index: {}]
  %s1 = inlined_call_operand.hbm [shape: f32[2,19,8,128], index: 1, kind: input, shape index: {}]
  %s2 = inlined_call_operand.vmem [shape: f32[2,24,8], index: 2, kind: output, shape index: {0}]
  %s3 = inlined_call_operand.vmem [shape: f32[2,24,8], index: 3, kind: output, shape index: {1}]
  %4 = xla_tuple %s2, %s3
  %s5 = sld [smem:[#allocation0]]
  $region53: #{tpu_custom_call.1} parent=0
    _
  %s7 = ssub.s32 1, %s5
  %s8 = scalar_select 0, %s7, %s5
  $region1: #{tpu_custom_call.1} parent=0
    #allocation2 [shape = 'u8[196608]{0}', space=vmem, size = 0x30000, scoped, tag = 'input window, operand 1']
    #allocation3 [shape = 's32[2]{0}', space=sflag, size = 0x8, scoped, tag = 'scoped memory for tpu_custom_call.1']
    %9 = vsyncpa [#allocation3], 0
    %s10 = scalar_lea.sflag [#allocation3], 1
    %11 = vsyncpa %s10, 0
    loop: start=0, step=1, limit=4
    $region2: #{tpu_custom_call.1} parent=1 // loop_pre_header
      _
    $region3: #{tpu_custom_call.1} parent=1 // loop_header
      %s13 = sphi 0, %s17
      %p14 = scmp.ge.s32.totalorder %s13, 4
      %s20 = sphi 0, %s32
      %s21 = sphi 0, %s28
      %s22 = sphi 0, %s20
      %s23 = sphi 0, %s21
      %s24 = sphi 0, %s22
      %s25 = sphi 0, %s23
      %s35 = sphi 0, %s37
      %s38 = sphi 0, %s35
      %s39 = sphi 0, %s38
      %s55 = sphi 0, %s39
      %s63 = sphi 0, %s65
      %s66 = sphi 0, %s63
      %s67 = sphi 0, %s66
      %s83 = sphi 0, %s67
      %s91 = sphi 0, %s93
      %s94 = sphi 0, %s91
      %s95 = sphi 0, %s94
      %s111 = sphi 0, %s95
      %s119 = sphi 0, %s121
      %s122 = sphi 0, %s119
      %s123 = sphi 0, %s122
      %s139 = sphi 0, %s123
    $region4: #{tpu_custom_call.1} parent=1 // loop_header_branch
      %16 = sbr.rel (%p14) target = $region8
    $region5: #{tpu_custom_call.1} parent=1 // loop_body
      %s18 = ssub.s32 %s13, 1
      %s19 = ssub.s32 %s13, 2
      %s26 = sadd.s32 1, %s21
      %p27 = scmp.ge.s32.totalorder %s26, 1
      %s28 = scalar_select %p27, 0, %s26
      %s29 = sadd.s32 1, %s20
      %s30 = scalar_select %p27, %s29, %s20
      %p31 = scmp.ge.s32.totalorder %s30, 2
      %s32 = scalar_select %p31, 0, %s30
      %s33 = ssub.s32 %s20, %s32
      %p34 = scmp.eq.s32.totalorder %s33, 0
      %s36 = sadd.s32 %s35, 1
      %s37 = scalar_select %p34, %s35, %s36
      %p40 = pneg %p34
      %p41 = scmp.eq.s32.totalorder %s13, 1
      %p42 = por %p40, %p41
      %p43 = scmp.ne.s32.totalorder %s35, %s38
      %p44 = scmp.eq.s32.totalorder %s13, 0
      %p45 = por %p43, %p44
      %p46 = scmp.ne.s32.totalorder %s35, %s38
      %p47 = scmp.eq.s32.totalorder %s18, 1
      %p48 = por %p46, %p47
      %p49 = scmp.ne.s32.totalorder %s38, %s39
      %p50 = scmp.eq.s32.totalorder %s18, 0
      %p51 = por %p49, %p50
      %p52 = scmp.ne.s32.totalorder %s38, %s39
      %p53 = scmp.eq.s32.totalorder %s19, 1
      %p54 = por %p52, %p53
      %p56 = scmp.ne.s32.totalorder %s39, %s55
      %p57 = scmp.eq.s32.totalorder %s19, 0
      %p58 = por %p56, %p57
      %s59 = ssub.s32 %s20, %s32
      %s60 = ssub.s32 %s21, %s28
      %s61 = sor.u32 %s59, %s60
      %p62 = scmp.eq.s32.totalorder %s61, 0
      %s64 = sadd.s32 %s63, 1
      %s65 = scalar_select %p62, %s63, %s64
      %p68 = pneg %p62
      %p69 = scmp.eq.s32.totalorder %s13, 1
      %p70 = por %p68, %p69
      %p71 = scmp.ne.s32.totalorder %s63, %s66
      %p72 = scmp.eq.s32.totalorder %s13, 0
      %p73 = por %p71, %p72
      %p74 = scmp.ne.s32.totalorder %s63, %s66
      %p75 = scmp.eq.s32.totalorder %s18, 1
      %p76 = por %p74, %p75
      %p77 = scmp.ne.s32.totalorder %s66, %s67
      %p78 = scmp.eq.s32.totalorder %s18, 0
      %p79 = por %p77, %p78
      %p80 = scmp.ne.s32.totalorder %s66, %s67
      %p81 = scmp.eq.s32.totalorder %s19, 1
      %p82 = por %p80, %p81
      %p84 = scmp.ne.s32.totalorder %s67, %s83
      %p85 = scmp.eq.s32.totalorder %s19, 0
      %p86 = por %p84, %p85
      %s87 = ssub.s32 %s20, %s32
      %s88 = ssub.s32 %s21, %s28
      %s89 = sor.u32 %s87, %s88
      %p90 = scmp.eq.s32.totalorder %s89, 0
      %s92 = sadd.s32 %s91, 1
      %s93 = scalar_select %p90, %s91, %s92
      %p96 = pneg %p90
      %p97 = scmp.eq.s32.totalorder %s13, 1
      %p98 = por %p96, %p97
      %p99 = scmp.ne.s32.totalorder %s91, %s94
      %p100 = scmp.eq.s32.totalorder %s13, 0
      %p101 = por %p99, %p100
      %p102 = scmp.ne.s32.totalorder %s91, %s94
      %p103 = scmp.eq.s32.totalorder %s18, 1
      %p104 = por %p102, %p103
      %p105 = scmp.ne.s32.totalorder %s94, %s95
      %p106 = scmp.eq.s32.totalorder %s18, 0
      %p107 = por %p105, %p106
      %p108 = scmp.ne.s32.totalorder %s94, %s95
      %p109 = scmp.eq.s32.totalorder %s19, 1
      %p110 = por %p108, %p109
      %p112 = scmp.ne.s32.totalorder %s95, %s111
      %p113 = scmp.eq.s32.totalorder %s19, 0
      %p114 = por %p112, %p113
      %s115 = ssub.s32 %s20, %s32
      %s116 = ssub.s32 %s21, %s28
      %s117 = sor.u32 %s115, %s116
      %p118 = scmp.eq.s32.totalorder %s117, 0
      %s120 = sadd.s32 %s119, 1
      %s121 = scalar_select %p118, %s119, %s120
      %p124 = pneg %p118
      %p125 = scmp.eq.s32.totalorder %s13, 1
      %p126 = por %p124, %p125
      %p127 = scmp.ne.s32.totalorder %s119, %s122
      %p128 = scmp.eq.s32.totalorder %s13, 0
      %p129 = por %p127, %p128
      %p130 = scmp.ne.s32.totalorder %s119, %s122
      %p131 = scmp.eq.s32.totalorder %s18, 1
      %p132 = por %p130, %p131
      %p133 = scmp.ne.s32.totalorder %s122, %s123
      %p134 = scmp.eq.s32.totalorder %s18, 0
      %p135 = por %p133, %p134
      %p136 = scmp.ne.s32.totalorder %s122, %s123
      %p137 = scmp.eq.s32.totalorder %s19, 1
      %p138 = por %p136, %p137
      %p140 = scmp.ne.s32.totalorder %s123, %s139
      %p141 = scmp.eq.s32.totalorder %s19, 0
      %p142 = por %p140, %p141
      %p143 = scmp.le.s32.totalorder 1, %s13
      %p144 = scmp.lt.s32.totalorder %s13, 3
      %p145 = pnand %p143, %p144
      %p146 = pneg %p145
      // Predicated region
      $region9: #{tpu_custom_call.1} parent=5 // pred_check
        _
      $region10: #{tpu_custom_call.1} parent=5 // pred_check_branch
        %148 = sbr.rel (%p145) target = $region12
      $region11: #{tpu_custom_call.1} parent=5 // pred_region
        %s149 = ssub.s32 %s13, 1
      $region12: #{tpu_custom_call.1} parent=5 // pred_fallthru
        _
      %p150 = scmp.lt.s32.totalorder %s13, 2
      // Predicated region
      $region13: #{tpu_custom_call.1} parent=5 // pred_check
        %p151 = pneg %p150
      $region14: #{tpu_custom_call.1} parent=5 // pred_check_branch
        %153 = sbr.rel (%p151) target = $region16
      $region15: #{tpu_custom_call.1} parent=5 // pred_region
        // Predicated region
        $region17: #{tpu_custom_call.1} parent=15 // pred_check
          %p154 = pneg %p45
        $region18: #{tpu_custom_call.1} parent=15 // pred_check_branch
          %156 = sbr.rel (%p154) target = $region20
        $region19: #{tpu_custom_call.1} parent=15 // pred_region
          %p157 = scmp.lt.s32.totalorder %s20, 1
          %s158 = scalar_select %p157, %s20, 1
          %s159 = smul.addr %s158, 8
          %s160 = scalar_lea.vmem %s0, %s159
        $region20: #{tpu_custom_call.1} parent=15 // pred_fallthru
          _
        // Predicated region
        $region21: #{tpu_custom_call.1} parent=15 // pred_check
          %p161 = pneg %p73
        $region22: #{tpu_custom_call.1} parent=15 // pred_check_branch
          %163 = sbr.rel (%p161) target = $region24
        $region23: #{tpu_custom_call.1} parent=15 // pred_region
          %s164 = sand.u32 %s63, 1
          %s165 = scalar_lea.sflag [#allocation3], %s164
          %s166 = sand.u32 %s63, 1
          %s167 = smul.addr %s166, 192
          %s168 = scalar_lea.vmem [#allocation2], %s167
          %s169 = smul.u32 24, %s21
          %s170 = ssub.s32 19, %s169
          %s171 = smul.u32 128, %s170
          %s173 = ssub.s32 3072, %s171
          %174 = vsyncadd %s165, %s173
          %p175 = scmp.ne.s32.totalorder 0, %s171
          %s176 = smul.addr %s20, 19
          %s177 = sadd.s32 %s169, %s176
          %s178 = smul.addr %s177, 128
          %s179 = scalar_lea.hbm %s1, %s178
          %s180 = smul.u32 8, %s170
          %s181 = sshll.u32 %s168, 4
          %s182 = int_to_ptr.vmem [resolvable:$true] %s181
          %s183 = sshll.u32 %s180, 4
          %187 = dma.hbm_to_vmem [thread:$0]  (%p175), %s179, %s183, %s182, %s165, 128, 128, 8
        $region24: #{tpu_custom_call.1} parent=15 // pred_fallthru
          _
      $region16: #{tpu_custom_call.1} parent=5 // pred_fallthru
        _
      %p188 = scmp.le.s32.totalorder 1, %s13
      %p189 = scmp.lt.s32.totalorder %s13, 3
      %p190 = pnand %p188, %p189
      %p191 = pneg %p190
      // Predicated region
      $region25: #{tpu_custom_call.1} parent=5 // pred_check
        _
      $region26: #{tpu_custom_call.1} parent=5 // pred_check_branch
        %193 = sbr.rel (%p190) target = $region28
      $region27: #{tpu_custom_call.1} parent=5 // pred_region
        %s194 = ssub.s32 %s13, 1
        %s195 = sand.u32 %s66, 1
        %s196 = scalar_lea.sflag [#allocation3], %s195
        %s197 = sand.u32 %s66, 1
        %s198 = smul.addr %s197, 192
        %s199 = scalar_lea.vmem [#allocation2], %s198
        // Predicated region
        $region29: #{tpu_custom_call.1} parent=27 // pred_check
          %p200 = pneg %p79
        $region30: #{tpu_custom_call.1} parent=27 // pred_check_branch
          %202 = sbr.rel (%p200) target = $region32
        $region31: #{tpu_custom_call.1} parent=27 // pred_region
          %203 = dma.done %s196, 3072
        $region32: #{tpu_custom_call.1} parent=27 // pred_fallthru
          _
        %p204 = scmp.lt.s32.totalorder %s22, 1
        %s205 = scalar_select %p204, %s22, 1
        %s206 = smul.addr %s205, 8
        %s207 = scalar_lea.vmem %s0, %s206
        %p208 = pneg %p51
        %p209 = pneg %p48
        %s210 = sand.u32 %s66, 1
        %s211 = scalar_lea.sflag [#allocation3], %s210
        %s212 = sand.u32 %s66, 1
        %s213 = smul.addr %s212, 192
        %s214 = scalar_lea.vmem [#allocation2], %s213
        %p215 = pneg %p79
        %p216 = pneg %p76
        %p217 = pneg %p107
        %p218 = pneg %p104
        %s219 = smul.u32 3, %s23
        %p220 = scmp.lt.s32.totalorder %s22, 1
        %s221 = scalar_select %p220, %s22, 1
        %p222 = scmp.lt.s32.totalorder %s219, 2
        %s223 = scalar_select %p222, %s219, 2
        %s224 = smul.addr %s221, 3
        %s225 = sadd.s32 %s223, %s224
        %s226 = smul.addr %s225, 8
        %s227 = scalar_lea.vmem %s2, %s226
        %p228 = pneg %p135
        %p229 = pneg %p132
        %s230 = smul.u32 3, %s23
        %p231 = scmp.lt.s32.totalorder %s22, 1
        %s232 = scalar_select %p231, %s22, 1
        %p233 = scmp.lt.s32.totalorder %s230, 2
        %s234 = scalar_select %p233, %s230, 2
        %s235 = smul.addr %s232, 3
        %s236 = sadd.s32 %s234, %s235
        %s237 = smul.addr %s236, 8
        %s238 = scalar_lea.vmem %s3, %s237
        %p239 = scmp.lt.s32.totalorder %s22, 1
        %s240 = scalar_select %p239, %s22, 1
        %s241 = smul.addr %s240, 8
        %s242 = scalar_lea.vmem %s0, %s241
        %s243 = smul.u32 24, %s23
        %s244 = ssub.s32 19, %s243
        %s245 = smul.u32 128, %s244
        %s246 = smul.u32 3, %s23
        %p247 = scmp.lt.s32.totalorder %s22, 1
        %s248 = scalar_select %p247, %s22, 1
        %p249 = scmp.lt.s32.totalorder %s246, 2
        %s250 = scalar_select %p249, %s246, 2
        %s251 = smul.addr %s248, 3
        %s252 = sadd.s32 %s250, %s251
        %s253 = smul.addr %s252, 8
        %s254 = scalar_lea.vmem %s2, %s253
        %s255 = smul.u32 3, %s23
        %s256 = smul.u32 3, %s23
        %p257 = scmp.lt.s32.totalorder %s22, 1
        %s258 = scalar_select %p257, %s22, 1
        %p259 = scmp.lt.s32.totalorder %s256, 2
        %s260 = scalar_select %p259, %s256, 2
        %s261 = smul.addr %s258, 3
        %s262 = sadd.s32 %s260, %s261
        %s263 = smul.addr %s262, 8
        %s264 = scalar_lea.vmem %s3, %s263
        %s265 = smul.u32 3, %s23
        %v266 = vlaneseq
        %v267 = vand.u32 %v266, 127
        %vm268 = vcmp.eq.s32.totalorder %v267, 0
        %v269 = vld [vmem:[%s242] sm:$0xff]
        %270 = vset.pattern.permute.xlu0 0
        %271 = vperm.xlu0 %270, %v269
        %v272 = vpop.permute.xlu0 %271
        %vm273 = vcmp.eq.s32.totalorder %v267, %v272
        %s274 = smul.u32 %s23, 24
        %v275 = vlaneseq
        %v276 = vshrl.u32 %v275, 7
        %v277 = vadd.s32 %v276, 8
        %v278 = vadd.s32 %v276, 16
        %s279 = smul.u32 0, 8
        %s280 = scalar_lea.vmem %s199, %s279 [#allocation2]
        %v281 = vld [vmem:[%s280] sm:$0xff]
        %v282 = vld [vmem:[%s280 + $0x8] sm:$0xff]
        %v283 = vld [vmem:[%s280 + $0x10] sm:$0xff]
        %v284 = vld [vmem:[%s280 + $0x18] sm:$0xff]
        %v285 = vld [vmem:[%s280 + $0x20] sm:$0xff]
        %v286 = vld [vmem:[%s280 + $0x28] sm:$0xff]
        %v287 = vld [vmem:[%s280 + $0x30] sm:$0xff]
        %v288 = vld [vmem:[%s280 + $0x38] sm:$0xff]
        %v289 = vld [vmem:[%s280 + $0x40] sm:$0xff]
        %v290 = vld [vmem:[%s280 + $0x48] sm:$0xff]
        %v291 = vld [vmem:[%s280 + $0x50] sm:$0xff]
        %v292 = vld [vmem:[%s280 + $0x58] sm:$0xff]
        %v293 = vld [vmem:[%s280 + $0x60] sm:$0xff]
        %v294 = vld [vmem:[%s280 + $0x68] sm:$0xff]
        %v295 = vld [vmem:[%s280 + $0x70] sm:$0xff]
        %v296 = vld [vmem:[%s280 + $0x78] sm:$0xff]
        %v297 = vld [vmem:[%s280 + $0x80] sm:$0xff]
        %v298 = vld [vmem:[%s280 + $0x88] sm:$0xff]
        %v299 = vld [vmem:[%s280 + $0x90] sm:$0xff]
        %v300 = vld [vmem:[%s280 + $0x98] sm:$0xff]
        %v301 = vld [vmem:[%s280 + $0xa0] sm:$0xff]
        %v302 = vld [vmem:[%s280 + $0xa8] sm:$0xff]
        %v303 = vld [vmem:[%s280 + $0xb0] sm:$0xff]
        %v304 = vld [vmem:[%s280 + $0xb8] sm:$0xff]
        %v305 = vsel %vm268, 1, 0
        %vm306 = vcmp.eq.s32.totalorder %v305, 1
        %v307 = vsel %vm306, %v281, 0.0
        %v308 = vsel %vm306, %v282, 0.0
        %v309 = vsel %vm306, %v283, 0.0
        %v310 = vsel %vm306, %v284, 0.0
        %v311 = vsel %vm306, %v285, 0.0
        %v312 = vsel %vm306, %v286, 0.0
        %v313 = vsel %vm306, %v287, 0.0
        %v314 = vsel %vm306, %v288, 0.0
        %v315 = vsel %vm306, %v289, 0.0
        %v316 = vsel %vm306, %v290, 0.0
        %v317 = vsel %vm306, %v291, 0.0
        %v318 = vsel %vm306, %v292, 0.0
        %v319 = vsel %vm306, %v293, 0.0
        %v320 = vsel %vm306, %v294, 0.0
        %v321 = vsel %vm306, %v295, 0.0
        %v322 = vsel %vm306, %v296, 0.0
        %v323 = vsel %vm306, %v297, 0.0
        %v324 = vsel %vm306, %v298, 0.0
        %v325 = vsel %vm306, %v299, 0.0
        %v326 = vsel %vm306, %v300, 0.0
        %v327 = vsel %vm306, %v301, 0.0
        %v328 = vsel %vm306, %v302, 0.0
        %v329 = vsel %vm306, %v303, 0.0
        %v330 = vsel %vm306, %v304, 0.0
        %331 = vadd.xlane.f32.xlu0 %v307
        %v332 = vpop.xlane.xlu0 %331
        %333 = vadd.xlane.f32.xlu0 %v308
        %v334 = vpop.xlane.xlu0 %333
        %335 = vadd.xlane.f32.xlu0 %v309
        %v336 = vpop.xlane.xlu0 %335
        %337 = vadd.xlane.f32.xlu0 %v310
        %v338 = vpop.xlane.xlu0 %337
        %339 = vadd.xlane.f32.xlu0 %v311
        %v340 = vpop.xlane.xlu0 %339
        %341 = vadd.xlane.f32.xlu0 %v312
        %v342 = vpop.xlane.xlu0 %341
        %343 = vadd.xlane.f32.xlu0 %v313
        %v344 = vpop.xlane.xlu0 %343
        %345 = vadd.xlane.f32.xlu0 %v314
        %v346 = vpop.xlane.xlu0 %345
        %347 = vadd.xlane.f32.xlu0 %v315
        %v348 = vpop.xlane.xlu0 %347
        %349 = vadd.xlane.f32.xlu0 %v316
        %v350 = vpop.xlane.xlu0 %349
        %351 = vadd.xlane.f32.xlu0 %v317
        %v352 = vpop.xlane.xlu0 %351
        %353 = vadd.xlane.f32.xlu0 %v318
        %v354 = vpop.xlane.xlu0 %353
        %355 = vadd.xlane.f32.xlu0 %v319
        %v356 = vpop.xlane.xlu0 %355
        %357 = vadd.xlane.f32.xlu0 %v320
        %v358 = vpop.xlane.xlu0 %357
        %359 = vadd.xlane.f32.xlu0 %v321
        %v360 = vpop.xlane.xlu0 %359
        %361 = vadd.xlane.f32.xlu0 %v322
        %v362 = vpop.xlane.xlu0 %361
        %363 = vadd.xlane.f32.xlu0 %v323
        %v364 = vpop.xlane.xlu0 %363
        %365 = vadd.xlane.f32.xlu0 %v324
        %v366 = vpop.xlane.xlu0 %365
        %367 = vadd.xlane.f32.xlu0 %v325
        %v368 = vpop.xlane.xlu0 %367
        %369 = vadd.xlane.f32.xlu0 %v326
        %v370 = vpop.xlane.xlu0 %369
        %371 = vadd.xlane.f32.xlu0 %v327
        %v372 = vpop.xlane.xlu0 %371
        %373 = vadd.xlane.f32.xlu0 %v328
        %v374 = vpop.xlane.xlu0 %373
        %375 = vadd.xlane.f32.xlu0 %v329
        %v376 = vpop.xlane.xlu0 %375
        %377 = vadd.xlane.f32.xlu0 %v330
        %v378 = vpop.xlane.xlu0 %377
        %v379 = vsel %vm273, 1, 0
        %vm380 = vcmp.eq.s32.totalorder %v379, 1
        %v381 = vsel %vm380, %v281, 0.0
        %v382 = vsel %vm380, %v282, 0.0
        %v383 = vsel %vm380, %v283, 0.0
        %v384 = vsel %vm380, %v284, 0.0
        %v385 = vsel %vm380, %v285, 0.0
        %v386 = vsel %vm380, %v286, 0.0
        %v387 = vsel %vm380, %v287, 0.0
        %v388 = vsel %vm380, %v288, 0.0
        %v389 = vsel %vm380, %v289, 0.0
        %v390 = vsel %vm380, %v290, 0.0
        %v391 = vsel %vm380, %v291, 0.0
        %v392 = vsel %vm380, %v292, 0.0
        %v393 = vsel %vm380, %v293, 0.0
        %v394 = vsel %vm380, %v294, 0.0
        %v395 = vsel %vm380, %v295, 0.0
        %v396 = vsel %vm380, %v296, 0.0
        %v397 = vsel %vm380, %v297, 0.0
        %v398 = vsel %vm380, %v298, 0.0
        %v399 = vsel %vm380, %v299, 0.0
        %v400 = vsel %vm380, %v300, 0.0
        %v401 = vsel %vm380, %v301, 0.0
        %v402 = vsel %vm380, %v302, 0.0
        %v403 = vsel %vm380, %v303, 0.0
        %v404 = vsel %vm380, %v304, 0.0
        %405 = vadd.xlane.f32.xlu0 %v381
        %v406 = vpop.xlane.xlu0 %405
        %407 = vadd.xlane.f32.xlu0 %v382
        %v408 = vpop.xlane.xlu0 %407
        %409 = vadd.xlane.f32.xlu0 %v383
        %v410 = vpop.xlane.xlu0 %409
        %411 = vadd.xlane.f32.xlu0 %v384
        %v412 = vpop.xlane.xlu0 %411
        %413 = vadd.xlane.f32.xlu0 %v385
        %v414 = vpop.xlane.xlu0 %413
        %415 = vadd.xlane.f32.xlu0 %v386
        %v416 = vpop.xlane.xlu0 %415
        %417 = vadd.xlane.f32.xlu0 %v387
        %v418 = vpop.xlane.xlu0 %417
        %419 = vadd.xlane.f32.xlu0 %v388
        %v420 = vpop.xlane.xlu0 %419
        %421 = vadd.xlane.f32.xlu0 %v389
        %v422 = vpop.xlane.xlu0 %421
        %423 = vadd.xlane.f32.xlu0 %v390
        %v424 = vpop.xlane.xlu0 %423
        %425 = vadd.xlane.f32.xlu0 %v391
        %v426 = vpop.xlane.xlu0 %425
        %427 = vadd.xlane.f32.xlu0 %v392
        %v428 = vpop.xlane.xlu0 %427
        %429 = vadd.xlane.f32.xlu0 %v393
        %v430 = vpop.xlane.xlu0 %429
        %431 = vadd.xlane.f32.xlu0 %v394
        %v432 = vpop.xlane.xlu0 %431
        %433 = vadd.xlane.f32.xlu0 %v395
        %v434 = vpop.xlane.xlu0 %433
        %435 = vadd.xlane.f32.xlu0 %v396
        %v436 = vpop.xlane.xlu0 %435
        %437 = vadd.xlane.f32.xlu0 %v397
        %v438 = vpop.xlane.xlu0 %437
        %439 = vadd.xlane.f32.xlu0 %v398
        %v440 = vpop.xlane.xlu0 %439
        %441 = vadd.xlane.f32.xlu0 %v399
        %v442 = vpop.xlane.xlu0 %441
        %443 = vadd.xlane.f32.xlu0 %v400
        %v444 = vpop.xlane.xlu0 %443
        %445 = vadd.xlane.f32.xlu0 %v401
        %v446 = vpop.xlane.xlu0 %445
        %447 = vadd.xlane.f32.xlu0 %v402
        %v448 = vpop.xlane.xlu0 %447
        %449 = vadd.xlane.f32.xlu0 %v403
        %v450 = vpop.xlane.xlu0 %449
        %451 = vadd.xlane.f32.xlu0 %v404
        %v452 = vpop.xlane.xlu0 %451
        %s453 = sadd.s32 %s274, 0
        %v454 = vstv %s453
        %v455 = vadd.s32 %v454, %v276
        %v456 = vadd.s32 %v454, %v277
        %v457 = vadd.s32 %v454, %v278
        %vm458 = vcmp.lt.s32.totalorder %v455, 19
        %vm459 = vcmp.lt.s32.totalorder %v456, 19
        %vm460 = vcmp.lt.s32.totalorder %v457, 19
        %v461 = vmax.f32 %v332, -1e+30
        %v462 = vmax.f32 %v334, -1e+30
        %v463 = vmax.f32 %v336, -1e+30
        %v464 = vmax.f32 %v338, -1e+30
        %v465 = vmax.f32 %v340, -1e+30
        %v466 = vmax.f32 %v342, -1e+30
        %v467 = vmax.f32 %v344, -1e+30
        %v468 = vmax.f32 %v346, -1e+30
        %v469 = vmax.f32 %v348, -1e+30
        %v470 = vmax.f32 %v350, -1e+30
        %v471 = vmax.f32 %v352, -1e+30
        %v472 = vmax.f32 %v354, -1e+30
        %v473 = vmax.f32 %v356, -1e+30
        %v474 = vmax.f32 %v358, -1e+30
        %v475 = vmax.f32 %v360, -1e+30
        %v476 = vmax.f32 %v362, -1e+30
        %v477 = vmax.f32 %v364, -1e+30
        %v478 = vmax.f32 %v366, -1e+30
        %v479 = vmax.f32 %v368, -1e+30
        %v480 = vmax.f32 %v370, -1e+30
        %v481 = vmax.f32 %v372, -1e+30
        %v482 = vmax.f32 %v374, -1e+30
        %v483 = vmax.f32 %v376, -1e+30
        %v484 = vmax.f32 %v378, -1e+30
        %v509 = vlaneseq
        %v510 = vshrl.u32 %v509, 7
        %v511 = vsub.s32 %v267, %v510
        %v512 = vrot.slane %v461, %v511
        %v513 = vlaneseq
        %v514 = vshrl.u32 %v513, 7
        %v515 = vsub.s32 %v267, %v514
        %v516 = vrot.slane %v462, %v515
        %v517 = vlaneseq
        %v518 = vshrl.u32 %v517, 7
        %v519 = vsub.s32 %v267, %v518
        %v520 = vrot.slane %v463, %v519
        %v521 = vlaneseq
        %v522 = vshrl.u32 %v521, 7
        %v523 = vsub.s32 %v267, %v522
        %v524 = vrot.slane %v464, %v523
        %v525 = vlaneseq
        %v526 = vshrl.u32 %v525, 7
        %v527 = vsub.s32 %v267, %v526
        %v528 = vrot.slane %v465, %v527
        %v529 = vlaneseq
        %v530 = vshrl.u32 %v529, 7
        %v531 = vsub.s32 %v267, %v530
        %v532 = vrot.slane %v466, %v531
        %v533 = vlaneseq
        %v534 = vshrl.u32 %v533, 7
        %v535 = vsub.s32 %v267, %v534
        %v536 = vrot.slane %v467, %v535
        %v537 = vlaneseq
        %v538 = vshrl.u32 %v537, 7
        %v539 = vsub.s32 %v267, %v538
        %v540 = vrot.slane %v468, %v539
        %v541 = vlaneseq
        %v542 = vshrl.u32 %v541, 7
        %v543 = vsub.s32 %v267, %v542
        %v544 = vrot.slane %v469, %v543
        %v545 = vlaneseq
        %v546 = vshrl.u32 %v545, 7
        %v547 = vsub.s32 %v267, %v546
        %v548 = vrot.slane %v470, %v547
        %v549 = vlaneseq
        %v550 = vshrl.u32 %v549, 7
        %v551 = vsub.s32 %v267, %v550
        %v552 = vrot.slane %v471, %v551
        %v553 = vlaneseq
        %v554 = vshrl.u32 %v553, 7
        %v555 = vsub.s32 %v267, %v554
        %v556 = vrot.slane %v472, %v555
        %v557 = vlaneseq
        %v558 = vshrl.u32 %v557, 7
        %v559 = vsub.s32 %v267, %v558
        %v560 = vrot.slane %v473, %v559
        %v561 = vlaneseq
        %v562 = vshrl.u32 %v561, 7
        %v563 = vsub.s32 %v267, %v562
        %v564 = vrot.slane %v474, %v563
        %v565 = vlaneseq
        %v566 = vshrl.u32 %v565, 7
        %v567 = vsub.s32 %v267, %v566
        %v568 = vrot.slane %v475, %v567
        %v569 = vlaneseq
        %v570 = vshrl.u32 %v569, 7
        %v571 = vsub.s32 %v267, %v570
        %v572 = vrot.slane %v476, %v571
        %v573 = vlaneseq
        %v574 = vshrl.u32 %v573, 7
        %v575 = vsub.s32 %v267, %v574
        %v576 = vrot.slane %v477, %v575
        %v577 = vlaneseq
        %v578 = vshrl.u32 %v577, 7
        %v579 = vsub.s32 %v267, %v578
        %v580 = vrot.slane %v478, %v579
        %v581 = vlaneseq
        %v582 = vshrl.u32 %v581, 7
        %v583 = vsub.s32 %v267, %v582
        %v584 = vrot.slane %v479, %v583
        %v585 = vlaneseq
        %v586 = vshrl.u32 %v585, 7
        %v587 = vsub.s32 %v267, %v586
        %v588 = vrot.slane %v480, %v587
        %v589 = vlaneseq
        %v590 = vshrl.u32 %v589, 7
        %v591 = vsub.s32 %v267, %v590
        %v592 = vrot.slane %v481, %v591
        %v593 = vlaneseq
        %v594 = vshrl.u32 %v593, 7
        %v595 = vsub.s32 %v267, %v594
        %v596 = vrot.slane %v482, %v595
        %v597 = vlaneseq
        %v598 = vshrl.u32 %v597, 7
        %v599 = vsub.s32 %v267, %v598
        %v600 = vrot.slane %v483, %v599
        %v601 = vlaneseq
        %v602 = vshrl.u32 %v601, 7
        %v603 = vsub.s32 %v267, %v602
        %v604 = vrot.slane %v484, %v603
        %vm605 = vcmask 1041409
        %v606 = vsel %vm605, %v516, %v512
        %vm607 = vcmask 1042434
        %v608 = vsel %vm607, %v520, %v606
        %vm609 = vcmask 1043459
        %v610 = vsel %vm609, %v524, %v608
        %vm611 = vcmask 1044484
        %v612 = vsel %vm611, %v528, %v610
        %vm613 = vcmask 1045509
        %v614 = vsel %vm613, %v532, %v612
        %vm615 = vcmask 1046534
        %v616 = vsel %vm615, %v536, %v614
        %vm617 = vcmask 1047559
        %v618 = vsel %vm617, %v540, %v616
        %v619 = vsel %vm605, %v548, %v544
        %v620 = vsel %vm607, %v552, %v619
        %v621 = vsel %vm609, %v556, %v620
        %v622 = vsel %vm611, %v560, %v621
        %v623 = vsel %vm613, %v564, %v622
        %v624 = vsel %vm615, %v568, %v623
        %v625 = vsel %vm617, %v572, %v624
        %v626 = vsel %vm605, %v580, %v576
        %v627 = vsel %vm607, %v584, %v626
        %v628 = vsel %vm609, %v588, %v627
        %v629 = vsel %vm611, %v592, %v628
        %v630 = vsel %vm613, %v596, %v629
        %v631 = vsel %vm615, %v600, %v630
        %v632 = vsel %vm617, %v604, %v631
        %v636 = vsel %vm458, %v618, -1e+30
        %v637 = vsel %vm459, %v625, -1e+30
        %v638 = vsel %vm460, %v632, -1e+30
        %vm639 = vcmask 64512
        %640 = vst.msk [vmem:[%s254] sm:$0xff] %vm639, %v636
        %641 = vst.msk [vmem:[%s254 + $0x8] sm:$0xff] %vm639, %v637
        %642 = vst.msk [vmem:[%s254 + $0x10] sm:$0xff] %vm639, %v638
        %v643 = vmax.f32 %v406, -1e+30
        %v644 = vmax.f32 %v408, -1e+30
        %v645 = vmax.f32 %v410, -1e+30
        %v646 = vmax.f32 %v412, -1e+30
        %v647 = vmax.f32 %v414, -1e+30
        %v648 = vmax.f32 %v416, -1e+30
        %v649 = vmax.f32 %v418, -1e+30
        %v650 = vmax.f32 %v420, -1e+30
        %v651 = vmax.f32 %v422, -1e+30
        %v652 = vmax.f32 %v424, -1e+30
        %v653 = vmax.f32 %v426, -1e+30
        %v654 = vmax.f32 %v428, -1e+30
        %v655 = vmax.f32 %v430, -1e+30
        %v656 = vmax.f32 %v432, -1e+30
        %v657 = vmax.f32 %v434, -1e+30
        %v658 = vmax.f32 %v436, -1e+30
        %v659 = vmax.f32 %v438, -1e+30
        %v660 = vmax.f32 %v440, -1e+30
        %v661 = vmax.f32 %v442, -1e+30
        %v662 = vmax.f32 %v444, -1e+30
        %v663 = vmax.f32 %v446, -1e+30
        %v664 = vmax.f32 %v448, -1e+30
        %v665 = vmax.f32 %v450, -1e+30
        %v666 = vmax.f32 %v452, -1e+30
        %v691 = vlaneseq
        %v692 = vshrl.u32 %v691, 7
        %v693 = vsub.s32 %v267, %v692
        %v694 = vrot.slane %v643, %v693
        %v695 = vlaneseq
        %v696 = vshrl.u32 %v695, 7
        %v697 = vsub.s32 %v267, %v696
        %v698 = vrot.slane %v644, %v697
        %v699 = vlaneseq
        %v700 = vshrl.u32 %v699, 7
        %v701 = vsub.s32 %v267, %v700
        %v702 = vrot.slane %v645, %v701
        %v703 = vlaneseq
        %v704 = vshrl.u32 %v703, 7
        %v705 = vsub.s32 %v267, %v704
        %v706 = vrot.slane %v646, %v705
        %v707 = vlaneseq
        %v708 = vshrl.u32 %v707, 7
        %v709 = vsub.s32 %v267, %v708
        %v710 = vrot.slane %v647, %v709
        %v711 = vlaneseq
        %v712 = vshrl.u32 %v711, 7
        %v713 = vsub.s32 %v267, %v712
        %v714 = vrot.slane %v648, %v713
        %v715 = vlaneseq
        %v716 = vshrl.u32 %v715, 7
        %v717 = vsub.s32 %v267, %v716
        %v718 = vrot.slane %v649, %v717
        %v719 = vlaneseq
        %v720 = vshrl.u32 %v719, 7
        %v721 = vsub.s32 %v267, %v720
        %v722 = vrot.slane %v650, %v721
        %v723 = vlaneseq
        %v724 = vshrl.u32 %v723, 7
        %v725 = vsub.s32 %v267, %v724
        %v726 = vrot.slane %v651, %v725
        %v727 = vlaneseq
        %v728 = vshrl.u32 %v727, 7
        %v729 = vsub.s32 %v267, %v728
        %v730 = vrot.slane %v652, %v729
        %v731 = vlaneseq
        %v732 = vshrl.u32 %v731, 7
        %v733 = vsub.s32 %v267, %v732
        %v734 = vrot.slane %v653, %v733
        %v735 = vlaneseq
        %v736 = vshrl.u32 %v735, 7
        %v737 = vsub.s32 %v267, %v736
        %v738 = vrot.slane %v654, %v737
        %v739 = vlaneseq
        %v740 = vshrl.u32 %v739, 7
        %v741 = vsub.s32 %v267, %v740
        %v742 = vrot.slane %v655, %v741
        %v743 = vlaneseq
        %v744 = vshrl.u32 %v743, 7
        %v745 = vsub.s32 %v267, %v744
        %v746 = vrot.slane %v656, %v745
        %v747 = vlaneseq
        %v748 = vshrl.u32 %v747, 7
        %v749 = vsub.s32 %v267, %v748
        %v750 = vrot.slane %v657, %v749
        %v751 = vlaneseq
        %v752 = vshrl.u32 %v751, 7
        %v753 = vsub.s32 %v267, %v752
        %v754 = vrot.slane %v658, %v753
        %v755 = vlaneseq
        %v756 = vshrl.u32 %v755, 7
        %v757 = vsub.s32 %v267, %v756
        %v758 = vrot.slane %v659, %v757
        %v759 = vlaneseq
        %v760 = vshrl.u32 %v759, 7
        %v761 = vsub.s32 %v267, %v760
        %v762 = vrot.slane %v660, %v761
        %v763 = vlaneseq
        %v764 = vshrl.u32 %v763, 7
        %v765 = vsub.s32 %v267, %v764
        %v766 = vrot.slane %v661, %v765
        %v767 = vlaneseq
        %v768 = vshrl.u32 %v767, 7
        %v769 = vsub.s32 %v267, %v768
        %v770 = vrot.slane %v662, %v769
        %v771 = vlaneseq
        %v772 = vshrl.u32 %v771, 7
        %v773 = vsub.s32 %v267, %v772
        %v774 = vrot.slane %v663, %v773
        %v775 = vlaneseq
        %v776 = vshrl.u32 %v775, 7
        %v777 = vsub.s32 %v267, %v776
        %v778 = vrot.slane %v664, %v777
        %v779 = vlaneseq
        %v780 = vshrl.u32 %v779, 7
        %v781 = vsub.s32 %v267, %v780
        %v782 = vrot.slane %v665, %v781
        %v783 = vlaneseq
        %v784 = vshrl.u32 %v783, 7
        %v785 = vsub.s32 %v267, %v784
        %v786 = vrot.slane %v666, %v785
        %v787 = vsel %vm605, %v698, %v694
        %v788 = vsel %vm607, %v702, %v787
        %v789 = vsel %vm609, %v706, %v788
        %v790 = vsel %vm611, %v710, %v789
        %v791 = vsel %vm613, %v714, %v790
        %v792 = vsel %vm615, %v718, %v791
        %v793 = vsel %vm617, %v722, %v792
        %v794 = vsel %vm605, %v730, %v726
        %v795 = vsel %vm607, %v734, %v794
        %v796 = vsel %vm609, %v738, %v795
        %v797 = vsel %vm611, %v742, %v796
        %v798 = vsel %vm613, %v746, %v797
        %v799 = vsel %vm615, %v750, %v798
        %v800 = vsel %vm617, %v754, %v799
        %v801 = vsel %vm605, %v762, %v758
        %v802 = vsel %vm607, %v766, %v801
        %v803 = vsel %vm609, %v770, %v802
        %v804 = vsel %vm611, %v774, %v803
        %v805 = vsel %vm613, %v778, %v804
        %v806 = vsel %vm615, %v782, %v805
        %v807 = vsel %vm617, %v786, %v806
        %v811 = vsel %vm458, %v793, -1e+30
        %v812 = vsel %vm459, %v800, -1e+30
        %v813 = vsel %vm460, %v807, -1e+30
        %814 = vst.msk [vmem:[%s264] sm:$0xff] %vm639, %v811
        %815 = vst.msk [vmem:[%s264 + $0x8] sm:$0xff] %vm639, %v812
        %816 = vst.msk [vmem:[%s264 + $0x10] sm:$0xff] %vm639, %v813
        %s817 = smul.u32 3, %s23
        %p818 = scmp.lt.s32.totalorder %s22, 1
        %s819 = scalar_select %p818, %s22, 1
        %p820 = scmp.lt.s32.totalorder %s817, 2
        %s821 = scalar_select %p820, %s817, 2
        %s822 = smul.addr %s819, 3
        %s823 = sadd.s32 %s821, %s822
        %s824 = smul.addr %s823, 8
        %s825 = scalar_lea.vmem %s2, %s824
        %s826 = smul.u32 3, %s23
        %p827 = scmp.lt.s32.totalorder %s22, 1
        %s828 = scalar_select %p827, %s22, 1
        %p829 = scmp.lt.s32.totalorder %s826, 2
        %s830 = scalar_select %p829, %s826, 2
        %s831 = smul.addr %s828, 3
        %s832 = sadd.s32 %s830, %s831
        %s833 = smul.addr %s832, 8
        %s834 = scalar_lea.vmem %s3, %s833
        // Predicated region
        $region33: #{tpu_custom_call.1} parent=27 // pred_check
          %p835 = pneg %p104
        $region34: #{tpu_custom_call.1} parent=27 // pred_check_branch
          %837 = sbr.rel (%p835) target = $region36
        $region35: #{tpu_custom_call.1} parent=27 // pred_region
          %s838 = smul.u32 3, %s23
        $region36: #{tpu_custom_call.1} parent=27 // pred_fallthru
          _
        // Predicated region
        $region37: #{tpu_custom_call.1} parent=27 // pred_check
          %p839 = pneg %p132
        $region38: #{tpu_custom_call.1} parent=27 // pred_check_branch
          %841 = sbr.rel (%p839) target = $region40
        $region39: #{tpu_custom_call.1} parent=27 // pred_region
          %s842 = smul.u32 3, %s23
        $region40: #{tpu_custom_call.1} parent=27 // pred_fallthru
          _
      $region28: #{tpu_custom_call.1} parent=5 // pred_fallthru
        _
      %p843 = scmp.le.s32.totalorder 2, %s13
      // Predicated region
      $region41: #{tpu_custom_call.1} parent=5 // pred_check
        %p844 = pneg %p843
      $region42: #{tpu_custom_call.1} parent=5 // pred_check_branch
        %846 = sbr.rel (%p844) target = $region44
      $region43: #{tpu_custom_call.1} parent=5 // pred_region
        %s847 = ssub.s32 %s13, 2
        // Predicated region
        $region45: #{tpu_custom_call.1} parent=43 // pred_check
          %p848 = pneg %p110
        $region46: #{tpu_custom_call.1} parent=43 // pred_check_branch
          %850 = sbr.rel (%p848) target = $region48
        $region47: #{tpu_custom_call.1} parent=43 // pred_region
          %s851 = smul.u32 3, %s25
          %p852 = scmp.lt.s32.totalorder %s24, 1
          %s853 = scalar_select %p852, %s24, 1
          %p854 = scmp.lt.s32.totalorder %s851, 2
          %s855 = scalar_select %p854, %s851, 2
          %s856 = smul.addr %s853, 3
          %s857 = sadd.s32 %s855, %s856
          %s858 = smul.addr %s857, 8
          %s859 = scalar_lea.vmem %s2, %s858
        $region48: #{tpu_custom_call.1} parent=43 // pred_fallthru
          _
        // Predicated region
        $region49: #{tpu_custom_call.1} parent=43 // pred_check
          %p860 = pneg %p138
        $region50: #{tpu_custom_call.1} parent=43 // pred_check_branch
          %862 = sbr.rel (%p860) target = $region52
        $region51: #{tpu_custom_call.1} parent=43 // pred_region
          %s863 = smul.u32 3, %s25
          %p864 = scmp.lt.s32.totalorder %s24, 1
          %s865 = scalar_select %p864, %s24, 1
          %p866 = scmp.lt.s32.totalorder %s863, 2
          %s867 = scalar_select %p866, %s863, 2
          %s868 = smul.addr %s865, 3
          %s869 = sadd.s32 %s867, %s868
          %s870 = smul.addr %s869, 8
          %s871 = scalar_lea.vmem %s3, %s870
        $region52: #{tpu_custom_call.1} parent=43 // pred_fallthru
          _
      $region44: #{tpu_custom_call.1} parent=5 // pred_fallthru
        _
    $region6: #{tpu_custom_call.1} parent=1 // loop_footer
      %s17 = sadd.s32 1, %s13
    $region7: #{tpu_custom_call.1} parent=1 // loop_footer_branch
      %12 = sbr.rel target = $region3
    $region8: #{tpu_custom_call.1} parent=1 // loop_exit
      _
    %872 = vsyncpa [#allocation3], 1
    %s873 = scalar_lea.sflag [#allocation3], 1
    %874 = vsyncpa %s873, 1

</llo_original>
